<compile_context>
chip_gen: v6e
topology: v6e:2x2x1
jax: 0.10.0
libtpu: 0.0.40
codegen_flags: <defaults>
</compile_context>

<pallas_src>
import math
import functools

import jax
import jax.numpy as jnp
import numpy as np
from jax.experimental import pallas as pl
from jax.experimental.pallas import tpu as pltpu  # noqa: F401  (TPU backend)

# --- config (mirrors the ModelConfig fields PicoBlock uses) ---
BATCH = 2
SEQ = 8
D_MODEL = 32
N_HEADS = 4
N_KV_HEADS = 2
HEAD_DIM = D_MODEL // N_HEADS           # 8
N_REP = N_HEADS // N_KV_HEADS           # 2
ACT_HIDDEN = 64                         # config.activation.act_hidden_dim
EPS = 1e-6                              # config.norm.eps
THETA = 10000.0                         # config.position_emb.theta


def pico_block_kernel(x_ref, wqkv_ref, wo_ref, w01_ref, w2_ref,
                      cos_ref, sin_ref, mask_ref, out_ref,
                      *, n_heads, head_dim, act_hidden, eps):
    f32, bf16 = jnp.float32, jnp.bfloat16
    Dh = head_dim
    HD = n_heads * head_dim

    x = x_ref[...].astype(f32)                               # (N, D), N = B*S

    # --- attention_norm: RMSNorm without the gain (gain folded into wqkv) ---
    xn = x * jax.lax.rsqrt(jnp.mean(x * x, axis=-1, keepdims=True) + eps)

    # --- fused projections [q | q@P | k | k@P | v]: one lane-dense (N, 160) matmul.
    #     GQA kv duplication, RoPE rotation P, 1/sqrt(Dh) and the attn-norm gain are all
    #     folded into wqkv wrapper-side. ---
    qkv = jnp.dot(xn.astype(bf16), wqkv_ref[...], preferred_element_type=f32)

    # --- RoPE on the head-packed (N, H*Dh) layout: out = t*cos + (t@P)*sin ---
    cos = cos_ref[...]                                        # (N, H*Dh)
    sin = sin_ref[...]
    q = qkv[:, 0 * HD:1 * HD] * cos + qkv[:, 1 * HD:2 * HD] * sin   # pre-scaled by 1/sqrt(Dh)
    k = qkv[:, 2 * HD:3 * HD] * cos + qkv[:, 3 * HD:4 * HD] * sin
    v = qkv[:, 4 * HD:5 * HD]

    qb, kb, vb = q.astype(bf16), k.astype(bf16), v.astype(bf16)
    mask = mask_ref[...]                                      # (N, N) additive, blocks cross-batch

    # --- attention core: static per-head loop (Mosaic would lower head-batched einsums
    #     to the same per-h matmuls) ---
    o_parts = []
    for h in range(n_heads):
        qh = qb[:, h * Dh:(h + 1) * Dh]
        kh = kb[:, h * Dh:(h + 1) * Dh]
        vh = vb[:, h * Dh:(h + 1) * Dh]
        s = jnp.einsum('nd,md->nm', qh, kh, preferred_element_type=f32) + mask
        s = s - jnp.max(s, axis=-1, keepdims=True)
        p = jnp.exp(s)
        p = p * pl.reciprocal(jnp.sum(p, axis=-1, keepdims=True), approx=True)
        o_parts.append(jnp.dot(p.astype(bf16), vh, preferred_element_type=f32))
    o = jnp.concatenate(o_parts, axis=-1)                     # (N, H*Dh)

    # --- o_proj with the head-sum folded into one K=H*Dh matmul, then residual ---
    h_res = x + jnp.dot(o.astype(bf16), wo_ref[...], preferred_element_type=f32)

    # --- swiglu_norm (gain folded into w01) + SwiGLU (w0|w1 fused -> 128-lane matmul) ---
    hn = h_res * jax.lax.rsqrt(jnp.mean(h_res * h_res, axis=-1, keepdims=True) + eps)
    ab = jnp.dot(hn.astype(bf16), w01_ref[...], preferred_element_type=f32)   # (N, 2*A)
    a, b = ab[:, :act_hidden], ab[:, act_hidden:]
    silu = a * (0.5 * (1.0 + jnp.tanh(0.5 * a)))              # sigmoid via tanh: 1 EUP push
    ff = jnp.dot((silu * b).astype(bf16), w2_ref[...], preferred_element_type=f32)

    out_ref[...] = (h_res + ff).astype(out_ref.dtype)


# ----- one-time (init-time) packing: NOT on the per-forward path -----

def rot_half_matrix(n):
    # rot[:, 2j] = -t[:, 2j+1]; rot[:, 2j+1] = t[:, 2j]   (interleaved-pair rotation)
    p = jnp.zeros((n, n), jnp.float32)
    j = jnp.arange(0, n, 2)
    p = p.at[j + 1, j].set(-1.0)
    p = p.at[j, j + 1].set(1.0)
    return p


def prepare_kernel_inputs(params, batch, seq):
    """Pack weights/tables once at init; the jitted forward only consumes the result."""
    Dh, H, Hkv, rep, D = HEAD_DIM, N_HEADS, N_KV_HEADS, N_REP, D_MODEL
    P = rot_half_matrix(Dh)
    g_attn = params["attn_norm_w"].reshape(D, 1)              # fold diag(g) @ W
    g_ff = params["ff_norm_w"].reshape(D, 1)

    def apply_P(w):                                           # per-head w @ P, same packing
        return jnp.einsum('dhj,jk->dhk', w.reshape(D, H, Dh), P).reshape(D, H * Dh)

    def dup_kv(w):                                            # GQA: duplicate kv heads
        return jnp.repeat((g_attn * w).reshape(D, Hkv, Dh), rep, axis=1).reshape(D, H * Dh)

    wq = g_attn * params["wq_t"] / math.sqrt(Dh)              # (D, H*Dh), scale folded in
    wk = dup_kv(params["wk_t"])
    wv = dup_kv(params["wv_t"])
    wqkv = jnp.concatenate([wq, apply_P(wq), wk, apply_P(wk), wv], axis=-1)   # (D, 5*H*Dh)

    w01 = g_ff * jnp.concatenate([params["w0_t"], params["w1_t"]], axis=-1)   # (D, 2*A)

    # RoPE tables per token row (token n = b*seq + s -> position s), interleaved pairs,
    # pre-tiled across heads to the head-packed (N, H*Dh) layout.
    inv = 1.0 / (THETA ** (jnp.arange(0, Dh, 2, dtype=jnp.float32) / Dh))
    pos = (jnp.arange(batch * seq) % seq).astype(jnp.float32)
    freqs = jnp.outer(pos, inv)                                               # (N, Dh/2)
    cos = jnp.tile(jnp.repeat(jnp.cos(freqs), 2, axis=-1), (1, H))            # (N, H*Dh)
    sin = jnp.tile(jnp.repeat(jnp.sin(freqs), 2, axis=-1), (1, H))

    # Additive mask blocking cross-batch attention (batch folded into the token axis).
    n = batch * seq
    rows = jnp.arange(n)[:, None] // seq
    cols = jnp.arange(n)[None, :] // seq
    mask = jnp.where(rows == cols, 0.0, -1e30).astype(jnp.float32)

    bf16 = jnp.bfloat16
    return {
        "wqkv": wqkv.astype(bf16),
        "wo": params["wo_t"].astype(bf16),
        "w01": w01.astype(bf16),
        "w2": params["w2_t"].astype(bf16),
        "cos": cos.astype(jnp.float32),
        "sin": sin.astype(jnp.float32),
        "mask": mask,
    }


def init_params(key):
    ks = jax.random.split(key, 7)

    def lin(k, fan_in, fan_out):
        bound = 1.0 / math.sqrt(fan_in)
        w = jax.random.uniform(k, (fan_in, fan_out), jnp.float32, -bound, bound)
        # round once to bf16-representable values so kernel (bf16) and reference (f32)
        # use numerically identical weights
        return w.astype(jnp.bfloat16).astype(jnp.float32)

    return {
        "wq_t": lin(ks[0], D_MODEL, N_HEADS * HEAD_DIM),     # stored pre-transposed (in, out)
        "wk_t": lin(ks[1], D_MODEL, N_KV_HEADS * HEAD_DIM),
        "wv_t": lin(ks[2], D_MODEL, N_KV_HEADS * HEAD_DIM),
        "wo_t": lin(ks[3], N_HEADS * HEAD_DIM, D_MODEL),
        "w0_t": lin(ks[4], D_MODEL, ACT_HIDDEN),
        "w1_t": lin(ks[5], D_MODEL, ACT_HIDDEN),
        "w2_t": lin(ks[6], ACT_HIDDEN, D_MODEL),
        "attn_norm_w": jnp.ones((D_MODEL,), jnp.float32),
        "ff_norm_w": jnp.ones((D_MODEL,), jnp.float32),
    }


@jax.jit
def pico_block_forward(x, packed):
    """x: (B, S, D); packed: cached output of prepare_kernel_inputs."""
    B, S, D = x.shape
    x2 = x.reshape(B * S, D)            # fold batch into the token (sublane) axis

    kernel = functools.partial(
        pico_block_kernel,
        n_heads=N_HEADS, head_dim=HEAD_DIM, act_hidden=ACT_HIDDEN, eps=EPS)

    # Grid-less pallas_call: all operands are tiny and live fully in VMEM.
    out = pl.pallas_call(
        kernel,
        out_shape=jax.ShapeDtypeStruct((B * S, D), x.dtype),
    )(x2, packed["wqkv"], packed["wo"], packed["w01"], packed["w2"],
      packed["cos"], packed["sin"], packed["mask"])

    return out.reshape(B, S, D)


# ----- pure-JAX reference (mirrors the PyTorch forward) -----

def reference_forward(x, params):
    B, S, D = x.shape

    def rmsnorm(t, w):
        return t * jax.lax.rsqrt(jnp.mean(t * t, -1, keepdims=True) + EPS) * w

    xn = rmsnorm(x, params["attn_norm_w"])
    q = (xn @ params["wq_t"]).reshape(B, S, N_HEADS, HEAD_DIM)
    k = (xn @ params["wk_t"]).reshape(B, S, N_KV_HEADS, HEAD_DIM)
    v = (xn @ params["wv_t"]).reshape(B, S, N_KV_HEADS, HEAD_DIM)

    inv = 1.0 / (THETA ** (jnp.arange(0, HEAD_DIM, 2, dtype=jnp.float32) / HEAD_DIM))
    freqs = jnp.outer(jnp.arange(S, dtype=jnp.float32), inv)      # (S, Dh/2)
    cos, sin = jnp.cos(freqs), jnp.sin(freqs)

    def rot(t):
        t2 = t.reshape(*t.shape[:-1], HEAD_DIM // 2, 2)
        re = t2[..., 0] * cos[None, :, None, :] - t2[..., 1] * sin[None, :, None, :]
        im = t2[..., 0] * sin[None, :, None, :] + t2[..., 1] * cos[None, :, None, :]
        return jnp.stack([re, im], axis=-1).reshape(t.shape)

    q, k = rot(q), rot(k)
    k = jnp.repeat(k, N_REP, axis=2)
    v = jnp.repeat(v, N_REP, axis=2)
    qh, kh, vh = (t.transpose(0, 2, 1, 3) for t in (q, k, v))
    s = jnp.einsum("bhqd,bhkd->bhqk", qh, kh) / math.sqrt(HEAD_DIM)
    p = jax.nn.softmax(s, axis=-1)
    o = jnp.einsum("bhqk,bhkd->bhqd", p, vh).transpose(0, 2, 1, 3).reshape(B, S, -1)
    h = x + o @ params["wo_t"]
    hn = rmsnorm(h, params["ff_norm_w"])
    a, b = hn @ params["w0_t"], hn @ params["w1_t"]
    return h + (a * jax.nn.sigmoid(a) * b) @ params["w2_t"]


if __name__ == "__main__":
    key = jax.random.PRNGKey(0)
    kx, kp = jax.random.split(key)
    x = jax.random.normal(kx, (BATCH, SEQ, D_MODEL), jnp.float32)
    params = init_params(kp)

    # One-time packing hoisted out of the per-call path (perf review item #1).
    packed = prepare_kernel_inputs(params, BATCH, SEQ)
    packed = jax.tree_util.tree_map(jax.block_until_ready, packed)

    out = jax.block_until_ready(pico_block_forward(x, packed))
    ref = reference_forward(x, params)

    assert out.shape == (BATCH, SEQ, D_MODEL)
    max_err = float(np.max(np.abs(np.asarray(out) - np.asarray(ref))))
    assert np.allclose(np.asarray(out), np.asarray(ref), rtol=2e-2, atol=2e-2), max_err
    print("KERNEL_OK")
</pallas_src>

<mosaic_0001>
module attributes {stable_mosaic.version = 11 : i64} {
  func.func @pico_block_kernel(%arg0: memref<16x32xf32, #tpu.memory_space<vmem>>, %arg1: memref<32x160xbf16, #tpu.memory_space<vmem>>, %arg2: memref<32x32xbf16, #tpu.memory_space<vmem>>, %arg3: memref<32x128xbf16, #tpu.memory_space<vmem>>, %arg4: memref<64x32xbf16, #tpu.memory_space<vmem>>, %arg5: memref<16x32xf32, #tpu.memory_space<vmem>>, %arg6: memref<16x32xf32, #tpu.memory_space<vmem>>, %arg7: memref<16x16xf32, #tpu.memory_space<vmem>>, %arg8: memref<16x32xf32, #tpu.memory_space<vmem>>) attributes {dimension_semantics = [], scalar_prefetch = 0 : i64, scratch_operands = 0 : i64, tpu.core_type = #tpu.core_type<tc>} {
    %c0 = arith.constant 0 : index
    %c0_0 = arith.constant 0 : index
    %0 = vector.load %arg0[%c0, %c0_0] : memref<16x32xf32, #tpu.memory_space<vmem>>, vector<16x32xf32>
    %1 = arith.mulf %0, %0 : vector<16x32xf32>
    %cst = arith.constant dense<0.000000e+00> : vector<16xf32>
    %2 = vector.multi_reduction <add>, %1, %cst [1] : vector<16x32xf32> to vector<16xf32>
    %3 = vector.shape_cast %2 : vector<16xf32> to vector<16x1xf32>
    %cst_1 = arith.constant 3.200000e+01 : f32
    %4 = vector.broadcast %cst_1 : f32 to vector<16x1xf32>
    %5 = arith.divf %3, %4 : vector<16x1xf32>
    %cst_2 = arith.constant 9.99999997E-7 : f32
    %6 = vector.broadcast %cst_2 : f32 to vector<16x1xf32>
    %7 = arith.addf %5, %6 : vector<16x1xf32>
    %8 = math.rsqrt %7 : vector<16x1xf32>
    %9 = vector.broadcast %8 : vector<16x1xf32> to vector<16x32xf32>
    %10 = arith.mulf %0, %9 : vector<16x32xf32>
    %11 = arith.truncf %10 : vector<16x32xf32> to vector<16x32xbf16>
    %c0_3 = arith.constant 0 : index
    %c0_4 = arith.constant 0 : index
    %12 = vector.load %arg1[%c0_3, %c0_4] : memref<32x160xbf16, #tpu.memory_space<vmem>>, vector<32x160xbf16>
    %cst_5 = arith.constant dense<0.000000e+00> : vector<16x160xf32>
    %13 = tpu.matmul %11, %12, %cst_5 {dimension_numbers = #tpu.dot_dimension_numbers<[1], [0], [0], [1], [0, 0, 1, 1], [], []>} : vector<16x32xbf16>, vector<32x160xbf16>, vector<16x160xf32> -> vector<16x160xf32>
    %c0_6 = arith.constant 0 : index
    %c0_7 = arith.constant 0 : index
    %14 = vector.load %arg5[%c0_6, %c0_7] : memref<16x32xf32, #tpu.memory_space<vmem>>, vector<16x32xf32>
    %c0_8 = arith.constant 0 : index
    %c0_9 = arith.constant 0 : index
    %15 = vector.load %arg6[%c0_8, %c0_9] : memref<16x32xf32, #tpu.memory_space<vmem>>, vector<16x32xf32>
    %16 = vector.extract_strided_slice %13 {offsets = [0, 0], sizes = [16, 32], strides = [1, 1]} : vector<16x160xf32> to vector<16x32xf32>
    %17 = arith.mulf %16, %14 : vector<16x32xf32>
    %18 = vector.extract_strided_slice %13 {offsets = [0, 32], sizes = [16, 32], strides = [1, 1]} : vector<16x160xf32> to vector<16x32xf32>
    %19 = arith.mulf %18, %15 : vector<16x32xf32>
    %20 = arith.addf %17, %19 : vector<16x32xf32>
    %21 = vector.extract_strided_slice %13 {offsets = [0, 64], sizes = [16, 32], strides = [1, 1]} : vector<16x160xf32> to vector<16x32xf32>
    %22 = arith.mulf %21, %14 : vector<16x32xf32>
    %23 = vector.extract_strided_slice %13 {offsets = [0, 96], sizes = [16, 32], strides = [1, 1]} : vector<16x160xf32> to vector<16x32xf32>
    %24 = arith.mulf %23, %15 : vector<16x32xf32>
    %25 = arith.addf %22, %24 : vector<16x32xf32>
    %26 = vector.extract_strided_slice %13 {offsets = [0, 128], sizes = [16, 32], strides = [1, 1]} : vector<16x160xf32> to vector<16x32xf32>
    %27 = arith.truncf %20 : vector<16x32xf32> to vector<16x32xbf16>
    %28 = arith.truncf %25 : vector<16x32xf32> to vector<16x32xbf16>
    %29 = arith.truncf %26 : vector<16x32xf32> to vector<16x32xbf16>
    %c0_10 = arith.constant 0 : index
    %c0_11 = arith.constant 0 : index
    %30 = vector.load %arg7[%c0_10, %c0_11] : memref<16x16xf32, #tpu.memory_space<vmem>>, vector<16x16xf32>
    %31 = vector.extract_strided_slice %27 {offsets = [0, 0], sizes = [16, 8], strides = [1, 1]} : vector<16x32xbf16> to vector<16x8xbf16>
    %32 = vector.extract_strided_slice %28 {offsets = [0, 0], sizes = [16, 8], strides = [1, 1]} : vector<16x32xbf16> to vector<16x8xbf16>
    %33 = vector.extract_strided_slice %29 {offsets = [0, 0], sizes = [16, 8], strides = [1, 1]} : vector<16x32xbf16> to vector<16x8xbf16>
    "tpu.trace_start"() <{level = 10 : i32, message = "nd,md->nm"}> : () -> ()
    %cst_12 = arith.constant dense<0.000000e+00> : vector<16x16xf32>
    %34 = tpu.matmul %31, %32, %cst_12 {dimension_numbers = #tpu.dot_dimension_numbers<[1], [1], [0], [0], [0, 0, 1, 0], [], []>} : vector<16x8xbf16>, vector<16x8xbf16>, vector<16x16xf32> -> vector<16x16xf32>
    "tpu.trace_stop"() : () -> ()
    %35 = arith.addf %34, %30 : vector<16x16xf32>
    %cst_13 = arith.constant dense<0xFF800000> : vector<16xf32>
    %36 = vector.multi_reduction <maximumf>, %35, %cst_13 [1] : vector<16x16xf32> to vector<16xf32>
    %37 = vector.shape_cast %36 : vector<16xf32> to vector<16x1xf32>
    %38 = vector.broadcast %37 : vector<16x1xf32> to vector<16x16xf32>
    %39 = arith.subf %35, %38 : vector<16x16xf32>
    %40 = math.exp %39 : vector<16x16xf32>
    %cst_14 = arith.constant dense<0.000000e+00> : vector<16xf32>
    %41 = vector.multi_reduction <add>, %40, %cst_14 [1] : vector<16x16xf32> to vector<16xf32>
    %42 = vector.shape_cast %41 : vector<16xf32> to vector<16x1xf32>
    %43 = tpu.reciprocal %42 {approx = true} : vector<16x1xf32> -> vector<16x1xf32>
    %44 = vector.broadcast %43 : vector<16x1xf32> to vector<16x16xf32>
    %45 = arith.mulf %40, %44 : vector<16x16xf32>
    %46 = arith.truncf %45 : vector<16x16xf32> to vector<16x16xbf16>
    %cst_15 = arith.constant dense<0.000000e+00> : vector<16x8xf32>
    %47 = tpu.matmul %46, %33, %cst_15 {dimension_numbers = #tpu.dot_dimension_numbers<[1], [0], [0], [1], [0, 0, 1, 1], [], []>} : vector<16x16xbf16>, vector<16x8xbf16>, vector<16x8xf32> -> vector<16x8xf32>
    %48 = vector.extract_strided_slice %27 {offsets = [0, 8], sizes = [16, 8], strides = [1, 1]} : vector<16x32xbf16> to vector<16x8xbf16>
    %49 = vector.extract_strided_slice %28 {offsets = [0, 8], sizes = [16, 8], strides = [1, 1]} : vector<16x32xbf16> to vector<16x8xbf16>
    %50 = vector.extract_strided_slice %29 {offsets = [0, 8], sizes = [16, 8], strides = [1, 1]} : vector<16x32xbf16> to vector<16x8xbf16>
    "tpu.trace_start"() <{level = 10 : i32, message = "nd,md->nm"}> : () -> ()
    %cst_16 = arith.constant dense<0.000000e+00> : vector<16x16xf32>
    %51 = tpu.matmul %48, %49, %cst_16 {dimension_numbers = #tpu.dot_dimension_numbers<[1], [1], [0], [0], [0, 0, 1, 0], [], []>} : vector<16x8xbf16>, vector<16x8xbf16>, vector<16x16xf32> -> vector<16x16xf32>
    "tpu.trace_stop"() : () -> ()
    %52 = arith.addf %51, %30 : vector<16x16xf32>
    %cst_17 = arith.constant dense<0xFF800000> : vector<16xf32>
    %53 = vector.multi_reduction <maximumf>, %52, %cst_17 [1] : vector<16x16xf32> to vector<16xf32>
    %54 = vector.shape_cast %53 : vector<16xf32> to vector<16x1xf32>
    %55 = vector.broadcast %54 : vector<16x1xf32> to vector<16x16xf32>
    %56 = arith.subf %52, %55 : vector<16x16xf32>
    %57 = math.exp %56 : vector<16x16xf32>
    %cst_18 = arith.constant dense<0.000000e+00> : vector<16xf32>
    %58 = vector.multi_reduction <add>, %57, %cst_18 [1] : vector<16x16xf32> to vector<16xf32>
    %59 = vector.shape_cast %58 : vector<16xf32> to vector<16x1xf32>
    %60 = tpu.reciprocal %59 {approx = true} : vector<16x1xf32> -> vector<16x1xf32>
    %61 = vector.broadcast %60 : vector<16x1xf32> to vector<16x16xf32>
    %62 = arith.mulf %57, %61 : vector<16x16xf32>
    %63 = arith.truncf %62 : vector<16x16xf32> to vector<16x16xbf16>
    %cst_19 = arith.constant dense<0.000000e+00> : vector<16x8xf32>
    %64 = tpu.matmul %63, %50, %cst_19 {dimension_numbers = #tpu.dot_dimension_numbers<[1], [0], [0], [1], [0, 0, 1, 1], [], []>} : vector<16x16xbf16>, vector<16x8xbf16>, vector<16x8xf32> -> vector<16x8xf32>
    %65 = vector.extract_strided_slice %27 {offsets = [0, 16], sizes = [16, 8], strides = [1, 1]} : vector<16x32xbf16> to vector<16x8xbf16>
    %66 = vector.extract_strided_slice %28 {offsets = [0, 16], sizes = [16, 8], strides = [1, 1]} : vector<16x32xbf16> to vector<16x8xbf16>
    %67 = vector.extract_strided_slice %29 {offsets = [0, 16], sizes = [16, 8], strides = [1, 1]} : vector<16x32xbf16> to vector<16x8xbf16>
    "tpu.trace_start"() <{level = 10 : i32, message = "nd,md->nm"}> : () -> ()
    %cst_20 = arith.constant dense<0.000000e+00> : vector<16x16xf32>
    %68 = tpu.matmul %65, %66, %cst_20 {dimension_numbers = #tpu.dot_dimension_numbers<[1], [1], [0], [0], [0, 0, 1, 0], [], []>} : vector<16x8xbf16>, vector<16x8xbf16>, vector<16x16xf32> -> vector<16x16xf32>
    "tpu.trace_stop"() : () -> ()
    %69 = arith.addf %68, %30 : vector<16x16xf32>
    %cst_21 = arith.constant dense<0xFF800000> : vector<16xf32>
    %70 = vector.multi_reduction <maximumf>, %69, %cst_21 [1] : vector<16x16xf32> to vector<16xf32>
    %71 = vector.shape_cast %70 : vector<16xf32> to vector<16x1xf32>
    %72 = vector.broadcast %71 : vector<16x1xf32> to vector<16x16xf32>
    %73 = arith.subf %69, %72 : vector<16x16xf32>
    %74 = math.exp %73 : vector<16x16xf32>
    %cst_22 = arith.constant dense<0.000000e+00> : vector<16xf32>
    %75 = vector.multi_reduction <add>, %74, %cst_22 [1] : vector<16x16xf32> to vector<16xf32>
    %76 = vector.shape_cast %75 : vector<16xf32> to vector<16x1xf32>
    %77 = tpu.reciprocal %76 {approx = true} : vector<16x1xf32> -> vector<16x1xf32>
    %78 = vector.broadcast %77 : vector<16x1xf32> to vector<16x16xf32>
    %79 = arith.mulf %74, %78 : vector<16x16xf32>
    %80 = arith.truncf %79 : vector<16x16xf32> to vector<16x16xbf16>
    %cst_23 = arith.constant dense<0.000000e+00> : vector<16x8xf32>
    %81 = tpu.matmul %80, %67, %cst_23 {dimension_numbers = #tpu.dot_dimension_numbers<[1], [0], [0], [1], [0, 0, 1, 1], [], []>} : vector<16x16xbf16>, vector<16x8xbf16>, vector<16x8xf32> -> vector<16x8xf32>
    %82 = vector.extract_strided_slice %27 {offsets = [0, 24], sizes = [16, 8], strides = [1, 1]} : vector<16x32xbf16> to vector<16x8xbf16>
    %83 = vector.extract_strided_slice %28 {offsets = [0, 24], sizes = [16, 8], strides = [1, 1]} : vector<16x32xbf16> to vector<16x8xbf16>
    %84 = vector.extract_strided_slice %29 {offsets = [0, 24], sizes = [16, 8], strides = [1, 1]} : vector<16x32xbf16> to vector<16x8xbf16>
    "tpu.trace_start"() <{level = 10 : i32, message = "nd,md->nm"}> : () -> ()
    %cst_24 = arith.constant dense<0.000000e+00> : vector<16x16xf32>
    %85 = tpu.matmul %82, %83, %cst_24 {dimension_numbers = #tpu.dot_dimension_numbers<[1], [1], [0], [0], [0, 0, 1, 0], [], []>} : vector<16x8xbf16>, vector<16x8xbf16>, vector<16x16xf32> -> vector<16x16xf32>
    "tpu.trace_stop"() : () -> ()
    %86 = arith.addf %85, %30 : vector<16x16xf32>
    %cst_25 = arith.constant dense<0xFF800000> : vector<16xf32>
    %87 = vector.multi_reduction <maximumf>, %86, %cst_25 [1] : vector<16x16xf32> to vector<16xf32>
    %88 = vector.shape_cast %87 : vector<16xf32> to vector<16x1xf32>
    %89 = vector.broadcast %88 : vector<16x1xf32> to vector<16x16xf32>
    %90 = arith.subf %86, %89 : vector<16x16xf32>
    %91 = math.exp %90 : vector<16x16xf32>
    %cst_26 = arith.constant dense<0.000000e+00> : vector<16xf32>
    %92 = vector.multi_reduction <add>, %91, %cst_26 [1] : vector<16x16xf32> to vector<16xf32>
    %93 = vector.shape_cast %92 : vector<16xf32> to vector<16x1xf32>
    %94 = tpu.reciprocal %93 {approx = true} : vector<16x1xf32> -> vector<16x1xf32>
    %95 = vector.broadcast %94 : vector<16x1xf32> to vector<16x16xf32>
    %96 = arith.mulf %91, %95 : vector<16x16xf32>
    %97 = arith.truncf %96 : vector<16x16xf32> to vector<16x16xbf16>
    %cst_27 = arith.constant dense<0.000000e+00> : vector<16x8xf32>
    %98 = tpu.matmul %97, %84, %cst_27 {dimension_numbers = #tpu.dot_dimension_numbers<[1], [0], [0], [1], [0, 0, 1, 1], [], []>} : vector<16x16xbf16>, vector<16x8xbf16>, vector<16x8xf32> -> vector<16x8xf32>
    %99 = tpu.concatenate %47, %64, %81, %98 in 1 : vector<16x8xf32>, vector<16x8xf32>, vector<16x8xf32>, vector<16x8xf32> -> vector<16x32xf32>
    %100 = arith.truncf %99 : vector<16x32xf32> to vector<16x32xbf16>
    %c0_28 = arith.constant 0 : index
    %c0_29 = arith.constant 0 : index
    %101 = vector.load %arg2[%c0_28, %c0_29] : memref<32x32xbf16, #tpu.memory_space<vmem>>, vector<32x32xbf16>
    %cst_30 = arith.constant dense<0.000000e+00> : vector<16x32xf32>
    %102 = tpu.matmul %100, %101, %cst_30 {dimension_numbers = #tpu.dot_dimension_numbers<[1], [0], [0], [1], [0, 0, 1, 1], [], []>} : vector<16x32xbf16>, vector<32x32xbf16>, vector<16x32xf32> -> vector<16x32xf32>
    %103 = arith.addf %0, %102 : vector<16x32xf32>
    %104 = arith.mulf %103, %103 : vector<16x32xf32>
    %cst_31 = arith.constant dense<0.000000e+00> : vector<16xf32>
    %105 = vector.multi_reduction <add>, %104, %cst_31 [1] : vector<16x32xf32> to vector<16xf32>
    %106 = vector.shape_cast %105 : vector<16xf32> to vector<16x1xf32>
    %cst_32 = arith.constant 3.200000e+01 : f32
    %107 = vector.broadcast %cst_32 : f32 to vector<16x1xf32>
    %108 = arith.divf %106, %107 : vector<16x1xf32>
    %cst_33 = arith.constant 9.99999997E-7 : f32
    %109 = vector.broadcast %cst_33 : f32 to vector<16x1xf32>
    %110 = arith.addf %108, %109 : vector<16x1xf32>
    %111 = math.rsqrt %110 : vector<16x1xf32>
    %112 = vector.broadcast %111 : vector<16x1xf32> to vector<16x32xf32>
    %113 = arith.mulf %103, %112 : vector<16x32xf32>
    %114 = arith.truncf %113 : vector<16x32xf32> to vector<16x32xbf16>
    %c0_34 = arith.constant 0 : index
    %c0_35 = arith.constant 0 : index
    %115 = vector.load %arg3[%c0_34, %c0_35] : memref<32x128xbf16, #tpu.memory_space<vmem>>, vector<32x128xbf16>
    %cst_36 = arith.constant dense<0.000000e+00> : vector<16x128xf32>
    %116 = tpu.matmul %114, %115, %cst_36 {dimension_numbers = #tpu.dot_dimension_numbers<[1], [0], [0], [1], [0, 0, 1, 1], [], []>} : vector<16x32xbf16>, vector<32x128xbf16>, vector<16x128xf32> -> vector<16x128xf32>
    %117 = vector.extract_strided_slice %116 {offsets = [0, 0], sizes = [16, 64], strides = [1, 1]} : vector<16x128xf32> to vector<16x64xf32>
    %118 = vector.extract_strided_slice %116 {offsets = [0, 64], sizes = [16, 64], strides = [1, 1]} : vector<16x128xf32> to vector<16x64xf32>
    %cst_37 = arith.constant 5.000000e-01 : f32
    %119 = vector.broadcast %cst_37 : f32 to vector<16x64xf32>
    %120 = arith.mulf %119, %117 : vector<16x64xf32>
    %121 = math.tanh %120 : vector<16x64xf32>
    %cst_38 = arith.constant 1.000000e+00 : f32
    %122 = vector.broadcast %cst_38 : f32 to vector<16x64xf32>
    %123 = arith.addf %122, %121 : vector<16x64xf32>
    %cst_39 = arith.constant 5.000000e-01 : f32
    %124 = vector.broadcast %cst_39 : f32 to vector<16x64xf32>
    %125 = arith.mulf %124, %123 : vector<16x64xf32>
    %126 = arith.mulf %117, %125 : vector<16x64xf32>
    %127 = arith.mulf %126, %118 : vector<16x64xf32>
    %128 = arith.truncf %127 : vector<16x64xf32> to vector<16x64xbf16>
    %c0_40 = arith.constant 0 : index
    %c0_41 = arith.constant 0 : index
    %129 = vector.load %arg4[%c0_40, %c0_41] : memref<64x32xbf16, #tpu.memory_space<vmem>>, vector<64x32xbf16>
    %cst_42 = arith.constant dense<0.000000e+00> : vector<16x32xf32>
    %130 = tpu.matmul %128, %129, %cst_42 {dimension_numbers = #tpu.dot_dimension_numbers<[1], [0], [0], [1], [0, 0, 1, 1], [], []>} : vector<16x64xbf16>, vector<64x32xbf16>, vector<16x32xf32> -> vector<16x32xf32>
    %131 = arith.addf %103, %130 : vector<16x32xf32>
    %c0_43 = arith.constant 0 : index
    %c0_44 = arith.constant 0 : index
    %132 = vector.load %arg8[%c0_43, %c0_44] : memref<16x32xf32, #tpu.memory_space<vmem>>, vector<16x32xf32>
    tpu.vector_store %arg8[%c0_43, %c0_44], %131 {strides = array<i32>} : memref<16x32xf32, #tpu.memory_space<vmem>>, vector<16x32xf32>,
    return
  }
}

</mosaic_0001>

<llo_original>
// kernel: pico_block_forward.1
$region0: #{pico_block_forward.1}
  #allocation0 [shape = 'u32[]', space=smem, size = 0x4, offset = 0x4, fixed_abs, tag = 'smem constant byte address 0x4 - core index']
  #allocation1 [shape = 'u32[144,128]{1,0:T(1,128)}', space=vmem, size = 0x12000, scoped, tag = 'internal scratch']
  %s0 = inlined_call_operand.vmem [shape: f32[16,32], index: 0, kind: input, shape index: {}]
  %s1 = inlined_call_operand.vmem [shape: bf16[32,160], index: 1, kind: input, shape index: {}]
  %s2 = inlined_call_operand.hbm [shape: bf16[32,32], index: 2, kind: input, shape index: {}]
  %s3 = inlined_call_operand.hbm [shape: bf16[32,128], index: 3, kind: input, shape index: {}]
  %s4 = inlined_call_operand.vmem [shape: bf16[64,32], index: 4, kind: input, shape index: {}]
  %s5 = inlined_call_operand.hbm [shape: f32[16,32], index: 5, kind: input, shape index: {}]
  %s6 = inlined_call_operand.hbm [shape: f32[16,32], index: 6, kind: input, shape index: {}]
  %s7 = inlined_call_operand.hbm [shape: f32[16,16], index: 7, kind: input, shape index: {}]
  %s8 = inlined_call_operand.hbm [shape: f32[16,32], index: 8, kind: output, shape index: {}]
  %s9 = sld [smem:[#allocation0]]
  $region62: #{pico_block_forward.1} parent=0
    _
  %s11 = ssub.s32 1, %s9
  %s12 = scalar_select 0, %s11, %s9
  $region1: #{pico_block_forward.1} parent=0
    #allocation2 [shape = 'u8[8192]{0}', space=vmem, size = 0x2000, scoped, tag = 'input window, operand 2, single buffered']
    #allocation3 [shape = 's32[1]{0}', space=sflag, size = 0x4, scoped, tag = 'scoped memory for pico_block_forward.1']
    #allocation4 [shape = 's32[1]{0}', space=sflag, size = 0x4, scoped, tag = 'scoped memory for pico_block_forward.1']
    #allocation5 [shape = 'u8[8192]{0}', space=vmem, size = 0x2000, scoped, tag = 'input window, operand 3, single buffered']
    #allocation6 [shape = 's32[1]{0}', space=sflag, size = 0x4, scoped, tag = 'scoped memory for pico_block_forward.1']
    #allocation7 [shape = 'u8[8192]{0}', space=vmem, size = 0x2000, scoped, tag = 'input window, operand 5, single buffered']
    #allocation8 [shape = 'u8[8192]{0}', space=vmem, size = 0x2000, scoped, tag = 'input window, operand 6, single buffered']
    #allocation9 [shape = 's32[1]{0}', space=sflag, size = 0x4, scoped, tag = 'scoped memory for pico_block_forward.1']
    #allocation10 [shape = 'u8[8192]{0}', space=vmem, size = 0x2000, scoped, tag = 'input window, operand 7, single buffered']
    #allocation11 [shape = 'u8[8192]{0}', space=vmem, size = 0x2000, scoped, tag = 'output window, operand 0, single buffered']
    %13 = vsyncpa [#allocation3], 0
    %14 = vsyncpa [#allocation6], 0
    %15 = vsyncpa [#allocation9], 0
    %16 = vsyncpa [#allocation4], 0
    // Predicated region
    $region2: #{pico_block_forward.1} parent=1 // pred_check
      _
    $region3: #{pico_block_forward.1} parent=1 // pred_check_branch
      %18 = sbr.rel (0) target = $region5
    $region4: #{pico_block_forward.1} parent=1 // pred_region
      _
    $region5: #{pico_block_forward.1} parent=1 // pred_fallthru
      _
    // Predicated region
    $region6: #{pico_block_forward.1} parent=1 // pred_check
      _
    $region7: #{pico_block_forward.1} parent=1 // pred_check_branch
      %20 = sbr.rel (0) target = $region9
    $region8: #{pico_block_forward.1} parent=1 // pred_region
      _
    $region9: #{pico_block_forward.1} parent=1 // pred_fallthru
      _
    // Predicated region
    $region10: #{pico_block_forward.1} parent=1 // pred_check
      _
    $region11: #{pico_block_forward.1} parent=1 // pred_check_branch
      %22 = sbr.rel (0) target = $region13
    $region12: #{pico_block_forward.1} parent=1 // pred_region
      %s24 = ssub.s32 256, 256
      %25 = vsyncadd [#allocation3], %s24
      %s26 = sshll.u32 [#allocation2], 4
      %s27 = int_to_ptr.vmem [resolvable:$true] %s26
      %32 = dma.hbm_to_vmem [thread:$0]  %s2, 256, %s27, [#allocation3], 64, 64, 4
    $region13: #{pico_block_forward.1} parent=1 // pred_fallthru
      _
    // Predicated region
    $region14: #{pico_block_forward.1} parent=1 // pred_check
      _
    $region15: #{pico_block_forward.1} parent=1 // pred_check_branch
      %34 = sbr.rel (0) target = $region17
    $region16: #{pico_block_forward.1} parent=1 // pred_region
      %s36 = ssub.s32 256, 256
      %37 = vsyncadd [#allocation6], %s36
      %s38 = sshll.u32 [#allocation5], 4
      %s39 = int_to_ptr.vmem [resolvable:$true] %s38
      %44 = dma.hbm_to_vmem [thread:$0]  %s3, 256, %s39, [#allocation6], 64, 64, 4
    $region17: #{pico_block_forward.1} parent=1 // pred_fallthru
      _
    // Predicated region
    $region18: #{pico_block_forward.1} parent=1 // pred_check
      _
    $region19: #{pico_block_forward.1} parent=1 // pred_check_branch
      %46 = sbr.rel (0) target = $region21
    $region20: #{pico_block_forward.1} parent=1 // pred_region
      _
    $region21: #{pico_block_forward.1} parent=1 // pred_fallthru
      _
    // Predicated region
    $region22: #{pico_block_forward.1} parent=1 // pred_check
      _
    $region23: #{pico_block_forward.1} parent=1 // pred_check_branch
      %48 = sbr.rel (0) target = $region25
    $region24: #{pico_block_forward.1} parent=1 // pred_region
      %s50 = ssub.s32 256, 256
      %51 = vsyncadd [#allocation6], %s50
      %s52 = sshll.u32 [#allocation7], 4
      %s53 = int_to_ptr.vmem [resolvable:$true] %s52
      %58 = dma.hbm_to_vmem [thread:$0]  %s5, 256, %s53, [#allocation6], 128, 128, 8
    $region25: #{pico_block_forward.1} parent=1 // pred_fallthru
      _
    // Predicated region
    $region26: #{pico_block_forward.1} parent=1 // pred_check
      _
    $region27: #{pico_block_forward.1} parent=1 // pred_check_branch
      %60 = sbr.rel (0) target = $region29
    $region28: #{pico_block_forward.1} parent=1 // pred_region
      %s62 = ssub.s32 256, 256
      %63 = vsyncadd [#allocation9], %s62
      %s64 = sshll.u32 [#allocation8], 4
      %s65 = int_to_ptr.vmem [resolvable:$true] %s64
      %70 = dma.hbm_to_vmem [thread:$0]  %s6, 256, %s65, [#allocation9], 128, 128, 8
    $region29: #{pico_block_forward.1} parent=1 // pred_fallthru
      _
    // Predicated region
    $region30: #{pico_block_forward.1} parent=1 // pred_check
      _
    $region31: #{pico_block_forward.1} parent=1 // pred_check_branch
      %72 = sbr.rel (0) target = $region33
    $region32: #{pico_block_forward.1} parent=1 // pred_region
      %s74 = ssub.s32 256, 256
      %75 = vsyncadd [#allocation9], %s74
      %s76 = sshll.u32 [#allocation10], 4
      %s77 = int_to_ptr.vmem [resolvable:$true] %s76
      %82 = dma.hbm_to_vmem [thread:$0]  %s7, 256, %s77, [#allocation9], 128, 128, 8
    $region33: #{pico_block_forward.1} parent=1 // pred_fallthru
      _
    // Predicated region
    $region34: #{pico_block_forward.1} parent=1 // pred_check
      _
    $region35: #{pico_block_forward.1} parent=1 // pred_check_branch
      %84 = sbr.rel (0) target = $region37
    $region36: #{pico_block_forward.1} parent=1 // pred_region
      %85 = dma.done [#allocation3], 256
    $region37: #{pico_block_forward.1} parent=1 // pred_fallthru
      _
    // Predicated region
    $region38: #{pico_block_forward.1} parent=1 // pred_check
      _
    $region39: #{pico_block_forward.1} parent=1 // pred_check_branch
      %87 = sbr.rel (0) target = $region41
    $region40: #{pico_block_forward.1} parent=1 // pred_region
      %88 = dma.done [#allocation6], 256
    $region41: #{pico_block_forward.1} parent=1 // pred_fallthru
      _
    // Predicated region
    $region42: #{pico_block_forward.1} parent=1 // pred_check
      _
    $region43: #{pico_block_forward.1} parent=1 // pred_check_branch
      %90 = sbr.rel (0) target = $region45
    $region44: #{pico_block_forward.1} parent=1 // pred_region
      %91 = dma.done [#allocation6], 256
    $region45: #{pico_block_forward.1} parent=1 // pred_fallthru
      _
    // Predicated region
    $region46: #{pico_block_forward.1} parent=1 // pred_check
      _
    $region47: #{pico_block_forward.1} parent=1 // pred_check_branch
      %93 = sbr.rel (0) target = $region49
    $region48: #{pico_block_forward.1} parent=1 // pred_region
      %94 = dma.done [#allocation9], 256
    $region49: #{pico_block_forward.1} parent=1 // pred_fallthru
      _
    // Predicated region
    $region50: #{pico_block_forward.1} parent=1 // pred_check
      _
    $region51: #{pico_block_forward.1} parent=1 // pred_check_branch
      %96 = sbr.rel (0) target = $region53
    $region52: #{pico_block_forward.1} parent=1 // pred_region
      %97 = dma.done [#allocation9], 256
    $region53: #{pico_block_forward.1} parent=1 // pred_fallthru
      _
    %v99 = vld [vmem:[%s0] sm:$0xff]
    %v100 = vld [vmem:[%s0 + $0x8] sm:$0xff]
    %v101 = vmul.f32 %v99, %v99
    %v102 = vmul.f32 %v100, %v100
    %vm103 = vcmask 261120
    %v104 = vsel %vm103, %v101, 0.0
    %105 = vadd.xlane.f32.xlu0 %v104
    %v106 = vpop.xlane.xlu0 %105
    %v107 = vsel %vm103, %v102, 0.0
    %108 = vadd.xlane.f32.xlu0 %v107
    %v109 = vpop.xlane.xlu0 %108
    %v110 = vrcp.pop 32.0
    %v111 = vmul.f32 %v106, %v110
    %v112 = vmul.f32 %v109, %v110
    %v113 = vadd.f32 %v111, 1e-06
    %v114 = vadd.f32 %v112, 1e-06
    %v115 = vrsqrt.pop %v113
    %v116 = vrsqrt.pop %v114
    %v117 = vmul.f32 %v99, %v115
    %v118 = vmul.f32 %v100, %v116
    %v119 = vpack.c.bf16 %v118, %v117
    %v120 = vld [vmem:[%s1] sm:$0xff]
    %v121 = vld [vmem:[%s1 + $0x8] sm:$0xff]
    %v122 = vld [vmem:[%s1 + $0x10] sm:$0xff]
    %v123 = vld [vmem:[%s1 + $0x18] sm:$0xff]
    %v128 = vunpack.c.l.b16 %v120
    %v129 = vunpack.c.h.b16 %v120
    %v130 = vunpack.c.l.b16 %v121
    %v131 = vunpack.c.h.b16 %v121
    %v132 = vunpack.c.l.b16 %v122
    %v133 = vunpack.c.h.b16 %v122
    %v134 = vunpack.c.l.b16 %v123
    %v135 = vunpack.c.h.b16 %v123
    %v136 = vpack.c.b16 %v130, %v128
    %v137 = vpack.c.b16 %v131, %v129
    %v138 = vpack.c.b16 %v134, %v132
    %v139 = vpack.c.b16 %v135, %v133
    %v145 = vsel %vm103, %v119, 0
    %147 = vmatprep.subr.bf16.mxu0 0
    %148 = vmatpush1.bf16.msra.mxu0 0
    %149 = vmatprep.subr.bf16.mxu0 0
    %150 = vmatpush1.bf16.msra.mxu0 0
    %151 = vmatprep.subr.bf16.mxu0 0
    %152 = vmatpush1.bf16.msra.mxu0 0
    %153 = vmatprep.subr.bf16.mxu0 0
    %154 = vmatpush1.bf16.msra.mxu0 0
    %155 = vmatprep.subr.bf16.mxu0 0
    %156 = vmatpush1.bf16.msra.mxu0 0
    %157 = vmatprep.subr.bf16.mxu0 0
    %158 = vmatpush1.bf16.msra.mxu0 0
    %159 = vmatprep.subr.bf16.mxu0 %v139
    %160 = vmatpush1.bf16.msra.mxu0 %v138
    %161 = vmatprep.subr.bf16.mxu0 %v137
    %162 = vmatpush1.bf16.msra.mxu0 %v136
    %163 = vmatprep.subr.bf16.mxu0 0
    %164 = vmatpush2.bf16.msra.mxu0 0
    %165 = vmatprep.subr.bf16.mxu0 0
    %166 = vmatpush2.bf16.msra.mxu0 0
    %167 = vmatprep.subr.bf16.mxu0 0
    %168 = vmatpush2.bf16.msra.mxu0 0
    %169 = vmatprep.subr.bf16.mxu0 0
    %170 = vmatpush2.bf16.msra.mxu0 0
    %171 = vmatprep.subr.bf16.mxu0 0
    %172 = vmatpush2.bf16.msra.mxu0 0
    %173 = vmatprep.subr.bf16.mxu0 0
    %174 = vmatpush2.bf16.msra.mxu0 0
    %175 = vmatprep.subr.bf16.mxu0 0
    %176 = vmatpush2.bf16.msra.mxu0 0
    %177 = vmatprep.subr.bf16.mxu0 0
    %178 = vmatpush2.bf16.msra.mxu0 0
    %179 = vmatprep.mubr.bf16.mxu0 0
    %180 = vmatmul.mubr.bf16.gmra.mxu0 %v145
    %v181 = vpop.f32.mrf.mxu0
    %v182 = vadd.f32 0.0, %v181
    %v183 = vpop.f32.mrf.mxu0
    %v184 = vadd.f32 0.0, %v183
    %v185 = vpop.f32.mrf.mxu0
    %v186 = vadd.f32 0.0, %v185
    %v187 = vpop.f32.mrf.mxu0
    %v188 = vadd.f32 0.0, %v187
    %189 = vdwg.mxu0
    %v190 = vld [vmem:[#allocation7] sm:$0xff]
    %v191 = vld [vmem:[#allocation7 + $0x8] sm:$0xff]
    %v192 = vld [vmem:[#allocation8] sm:$0xff]
    %v193 = vld [vmem:[#allocation8 + $0x8] sm:$0xff]
    %v194 = vmul.f32 %v182, %v190
    %v195 = vmul.f32 %v186, %v191
    %198 = vrot.lane.b32.xlu0 %v192, 32
    %v199 = vpop.permute.xlu0 %198
    %200 = vrot.lane.b32.xlu0 %v193, 32
    %v201 = vpop.permute.xlu0 %200
    %v204 = vmul.f32 %v182, %v199
    %v205 = vmul.f32 %v186, %v201
    %208 = vrot.lane.b32.xlu0 %v204, 96
    %v209 = vpop.permute.xlu0 %208
    %210 = vrot.lane.b32.xlu0 %v205, 96
    %v211 = vpop.permute.xlu0 %210
    %v214 = vadd.f32 %v194, %v209
    %v215 = vadd.f32 %v195, %v211
    %218 = vrot.lane.b32.xlu0 %v190, 64
    %v219 = vpop.permute.xlu0 %218
    %220 = vrot.lane.b32.xlu0 %v191, 64
    %v221 = vpop.permute.xlu0 %220
    %v224 = vmul.f32 %v182, %v219
    %v225 = vmul.f32 %v186, %v221
    %226 = vrot.lane.b32.xlu0 %v192, 96
    %v227 = vpop.permute.xlu0 %226
    %228 = vrot.lane.b32.xlu0 %v193, 96
    %v229 = vpop.permute.xlu0 %228
    %v232 = vmul.f32 %v182, %v227
    %v233 = vmul.f32 %v186, %v229
    %236 = vrot.lane.b32.xlu0 %v232, 96
    %v237 = vpop.permute.xlu0 %236
    %238 = vrot.lane.b32.xlu0 %v233, 96
    %v239 = vpop.permute.xlu0 %238
    %v242 = vadd.f32 %v224, %v237
    %v243 = vadd.f32 %v225, %v239
    %v244 = vpack.c.bf16 %v215, %v214
    %v245 = vpack.c.bf16 %v243, %v242
    %v246 = vpack.c.bf16 %v188, %v184
    %v247 = vld [vmem:[#allocation10] sm:$0xff]
    %v248 = vld [vmem:[#allocation10 + $0x8] sm:$0xff]
    %250 = vrot.lane.b32.xlu0 %v245, 64
    %v251 = vpop.permute.xlu0 %250
    %vm252 = vcmask 64512
    %v254 = vsel %vm252, %v244, 0
    %v257 = vsel %vm252, %v251, 0
    %259 = vmatprep.subr.bf16.mxu0 0
    %260 = vmatpush1.bf16.xpose.msra.mxu0 0
    %261 = vmatprep.subr.bf16.mxu0 0
    %262 = vmatpush1.bf16.xpose.msra.mxu0 0
    %263 = vmatprep.subr.bf16.mxu0 0
    %264 = vmatpush1.bf16.xpose.msra.mxu0 0
    %265 = vmatprep.subr.bf16.mxu0 0
    %266 = vmatpush1.bf16.xpose.msra.mxu0 0
    %267 = vmatprep.subr.bf16.mxu0 0
    %268 = vmatpush1.bf16.xpose.msra.mxu0 0
    %269 = vmatprep.subr.bf16.mxu0 0
    %270 = vmatpush1.bf16.xpose.msra.mxu0 0
    %271 = vmatprep.subr.bf16.mxu0 0
    %272 = vmatpush1.bf16.xpose.msra.mxu0 0
    %273 = vmatprep.subr.bf16.mxu0 0
    %274 = vmatpush1.bf16.xpose.msra.mxu0 %v257
    %275 = vmatprep.subr.bf16.mxu0 0
    %276 = vmatpush2.bf16.xpose.msra.mxu0 0
    %277 = vmatprep.subr.bf16.mxu0 0
    %278 = vmatpush2.bf16.xpose.msra.mxu0 0
    %279 = vmatprep.subr.bf16.mxu0 0
    %280 = vmatpush2.bf16.xpose.msra.mxu0 0
    %281 = vmatprep.subr.bf16.mxu0 0
    %282 = vmatpush2.bf16.xpose.msra.mxu0 0
    %283 = vmatprep.subr.bf16.mxu0 0
    %284 = vmatpush2.bf16.xpose.msra.mxu0 0
    %285 = vmatprep.subr.bf16.mxu0 0
    %286 = vmatpush2.bf16.xpose.msra.mxu0 0
    %287 = vmatprep.subr.bf16.mxu0 0
    %288 = vmatpush2.bf16.xpose.msra.mxu0 0
    %289 = vmatprep.subr.bf16.mxu0 0
    %290 = vmatpush2.bf16.xpose.msra.mxu0 0
    %291 = vmatprep.mubr.bf16.mxu0 0
    %292 = vmatmul.mubr.bf16.gmra.mxu0 %v254
    %v293 = vpop.f32.mrf.mxu0
    %v294 = vadd.f32 %v247, %v293
    %v295 = vpop.f32.mrf.mxu0
    %v296 = vpop.f32.mrf.mxu0
    %v297 = vadd.f32 %v248, %v296
    %v298 = vpop.f32.mrf.mxu0
    %299 = vdwg.mxu0
    %vm300 = vcmask 130048
    %v301 = vsel %vm300, %v294, -inf
    %302 = vmax.xlane.f32.xlu0 %v301
    %v303 = vpop.xlane.xlu0 %302
    %v304 = vsel %vm300, %v297, -inf
    %305 = vmax.xlane.f32.xlu0 %v304
    %v306 = vpop.xlane.xlu0 %305
    %v307 = vsub.f32 %v294, %v303
    %v308 = vsub.f32 %v297, %v306
    %v309 = vmul.f32 %v307, 1.442695
    %v310 = vpow.pop %v309
    %v311 = vmul.f32 %v308, 1.442695
    %v312 = vpow.pop %v311
    %v313 = vsel %vm300, %v310, 0.0
    %314 = vadd.xlane.f32.xlu0 %v313
    %v315 = vpop.xlane.xlu0 %314
    %v316 = vsel %vm300, %v312, 0.0
    %317 = vadd.xlane.f32.xlu0 %v316
    %v318 = vpop.xlane.xlu0 %317
    %v319 = vrcp.pop %v315
    %v320 = vrcp.pop %v318
    %v321 = vmul.f32 %v310, %v319
    %v322 = vmul.f32 %v312, %v320
    %v323 = vpack.c.bf16 %v322, %v321
    %v325 = vsel %vm300, %v323, 0
    %327 = vmatprep.subr.bf16.mxu0 0
    %328 = vmatpush1.bf16.msra.mxu0 0
    %329 = vmatprep.subr.bf16.mxu0 0
    %330 = vmatpush1.bf16.msra.mxu0 0
    %331 = vmatprep.subr.bf16.mxu0 0
    %332 = vmatpush1.bf16.msra.mxu0 0
    %333 = vmatprep.subr.bf16.mxu0 0
    %334 = vmatpush1.bf16.msra.mxu0 0
    %335 = vmatprep.subr.bf16.mxu0 0
    %336 = vmatpush1.bf16.msra.mxu0 0
    %337 = vmatprep.subr.bf16.mxu0 0
    %338 = vmatpush1.bf16.msra.mxu0 0
    %339 = vmatprep.subr.bf16.mxu0 0
    %340 = vmatpush1.bf16.msra.mxu0 0
    %341 = vmatprep.subr.bf16.mxu0 0
    %342 = vmatpush1.bf16.msra.mxu0 %v246
    %343 = vmatprep.subr.bf16.mxu0 0
    %344 = vmatpush2.bf16.msra.mxu0 0
    %345 = vmatprep.subr.bf16.mxu0 0
    %346 = vmatpush2.bf16.msra.mxu0 0
    %347 = vmatprep.subr.bf16.mxu0 0
    %348 = vmatpush2.bf16.msra.mxu0 0
    %349 = vmatprep.subr.bf16.mxu0 0
    %350 = vmatpush2.bf16.msra.mxu0 0
    %351 = vmatprep.subr.bf16.mxu0 0
    %352 = vmatpush2.bf16.msra.mxu0 0
    %353 = vmatprep.subr.bf16.mxu0 0
    %354 = vmatpush2.bf16.msra.mxu0 0
    %355 = vmatprep.subr.bf16.mxu0 0
    %356 = vmatpush2.bf16.msra.mxu0 0
    %357 = vmatprep.subr.bf16.mxu0 0
    %358 = vmatpush2.bf16.msra.mxu0 0
    %359 = vmatprep.mubr.bf16.mxu0 0
    %360 = vmatmul.mubr.bf16.gmra.mxu0 %v325
    %v361 = vpop.f32.mrf.mxu0
    %v362 = vadd.f32 0.0, %v361
    %v363 = vpop.f32.mrf.mxu0
    %v364 = vpop.f32.mrf.mxu0
    %v365 = vadd.f32 0.0, %v364
    %v366 = vpop.f32.mrf.mxu0
    %367 = vdwg.mxu0
    %369 = vrot.lane.b32.xlu0 %v244, 120
    %v370 = vpop.permute.xlu0 %369
    %371 = vrot.lane.b32.xlu0 %v245, 56
    %v372 = vpop.permute.xlu0 %371
    %v374 = vsel %vm252, %v370, 0
    %v377 = vsel %vm252, %v372, 0
    %379 = vmatprep.subr.bf16.mxu0 0
    %380 = vmatpush1.bf16.xpose.msra.mxu0 0
    %381 = vmatprep.subr.bf16.mxu0 0
    %382 = vmatpush1.bf16.xpose.msra.mxu0 0
    %383 = vmatprep.subr.bf16.mxu0 0
    %384 = vmatpush1.bf16.xpose.msra.mxu0 0
    %385 = vmatprep.subr.bf16.mxu0 0
    %386 = vmatpush1.bf16.xpose.msra.mxu0 0
    %387 = vmatprep.subr.bf16.mxu0 0
    %388 = vmatpush1.bf16.xpose.msra.mxu0 0
    %389 = vmatprep.subr.bf16.mxu0 0
    %390 = vmatpush1.bf16.xpose.msra.mxu0 0
    %391 = vmatprep.subr.bf16.mxu0 0
    %392 = vmatpush1.bf16.xpose.msra.mxu0 0
    %393 = vmatprep.subr.bf16.mxu0 0
    %394 = vmatpush1.bf16.xpose.msra.mxu0 %v377
    %395 = vmatprep.subr.bf16.mxu0 0
    %396 = vmatpush2.bf16.xpose.msra.mxu0 0
    %397 = vmatprep.subr.bf16.mxu0 0
    %398 = vmatpush2.bf16.xpose.msra.mxu0 0
    %399 = vmatprep.subr.bf16.mxu0 0
    %400 = vmatpush2.bf16.xpose.msra.mxu0 0
    %401 = vmatprep.subr.bf16.mxu0 0
    %402 = vmatpush2.bf16.xpose.msra.mxu0 0
    %403 = vmatprep.subr.bf16.mxu0 0
    %404 = vmatpush2.bf16.xpose.msra.mxu0 0
    %405 = vmatprep.subr.bf16.mxu0 0
    %406 = vmatpush2.bf16.xpose.msra.mxu0 0
    %407 = vmatprep.subr.bf16.mxu0 0
    %408 = vmatpush2.bf16.xpose.msra.mxu0 0
    %409 = vmatprep.subr.bf16.mxu0 0
    %410 = vmatpush2.bf16.xpose.msra.mxu0 0
    %411 = vmatprep.mubr.bf16.mxu0 0
    %412 = vmatmul.mubr.bf16.gmra.mxu0 %v374
    %v413 = vpop.f32.mrf.mxu0
    %v414 = vadd.f32 %v247, %v413
    %v415 = vpop.f32.mrf.mxu0
    %v416 = vpop.f32.mrf.mxu0
    %v417 = vadd.f32 %v248, %v416
    %v418 = vpop.f32.mrf.mxu0
    %419 = vdwg.mxu0
    %v420 = vsel %vm300, %v414, -inf
    %421 = vmax.xlane.f32.xlu0 %v420
    %v422 = vpop.xlane.xlu0 %421
    %v423 = vsel %vm300, %v417, -inf
    %424 = vmax.xlane.f32.xlu0 %v423
    %v425 = vpop.xlane.xlu0 %424
    %v426 = vsub.f32 %v414, %v422
    %v427 = vsub.f32 %v417, %v425
    %v428 = vmul.f32 %v426, 1.442695
    %v429 = vpow.pop %v428
    %v430 = vmul.f32 %v427, 1.442695
    %v431 = vpow.pop %v430
    %v432 = vsel %vm300, %v429, 0.0
    %433 = vadd.xlane.f32.xlu0 %v432
    %v434 = vpop.xlane.xlu0 %433
    %v435 = vsel %vm300, %v431, 0.0
    %436 = vadd.xlane.f32.xlu0 %v435
    %v437 = vpop.xlane.xlu0 %436
    %v438 = vrcp.pop %v434
    %v439 = vrcp.pop %v437
    %v440 = vmul.f32 %v429, %v438
    %v441 = vmul.f32 %v431, %v439
    %v442 = vpack.c.bf16 %v441, %v440
    %444 = vrot.lane.b32.xlu0 %v246, 120
    %v445 = vpop.permute.xlu0 %444
    %v448 = vsel %vm300, %v442, 0
    %450 = vmatprep.subr.bf16.mxu0 0
    %451 = vmatpush1.bf16.msra.mxu0 0
    %452 = vmatprep.subr.bf16.mxu0 0
    %453 = vmatpush1.bf16.msra.mxu0 0
    %454 = vmatprep.subr.bf16.mxu0 0
    %455 = vmatpush1.bf16.msra.mxu0 0
    %456 = vmatprep.subr.bf16.mxu0 0
    %457 = vmatpush1.bf16.msra.mxu0 0
    %458 = vmatprep.subr.bf16.mxu0 0
    %459 = vmatpush1.bf16.msra.mxu0 0
    %460 = vmatprep.subr.bf16.mxu0 0
    %461 = vmatpush1.bf16.msra.mxu0 0
    %462 = vmatprep.subr.bf16.mxu0 0
    %463 = vmatpush1.bf16.msra.mxu0 0
    %464 = vmatprep.subr.bf16.mxu0 0
    %465 = vmatpush1.bf16.msra.mxu0 %v445
    %466 = vmatprep.subr.bf16.mxu0 0
    %467 = vmatpush2.bf16.msra.mxu0 0
    %468 = vmatprep.subr.bf16.mxu0 0
    %469 = vmatpush2.bf16.msra.mxu0 0
    %470 = vmatprep.subr.bf16.mxu0 0
    %471 = vmatpush2.bf16.msra.mxu0 0
    %472 = vmatprep.subr.bf16.mxu0 0
    %473 = vmatpush2.bf16.msra.mxu0 0
    %474 = vmatprep.subr.bf16.mxu0 0
    %475 = vmatpush2.bf16.msra.mxu0 0
    %476 = vmatprep.subr.bf16.mxu0 0
    %477 = vmatpush2.bf16.msra.mxu0 0
    %478 = vmatprep.subr.bf16.mxu0 0
    %479 = vmatpush2.bf16.msra.mxu0 0
    %480 = vmatprep.subr.bf16.mxu0 0
    %481 = vmatpush2.bf16.msra.mxu0 0
    %482 = vmatprep.mubr.bf16.mxu0 0
    %483 = vmatmul.mubr.bf16.gmra.mxu0 %v448
    %v484 = vpop.f32.mrf.mxu0
    %v485 = vadd.f32 0.0, %v484
    %v486 = vpop.f32.mrf.mxu0
    %v487 = vpop.f32.mrf.mxu0
    %v488 = vadd.f32 0.0, %v487
    %v489 = vpop.f32.mrf.mxu0
    %490 = vdwg.mxu0
    %491 = vrot.lane.b32.xlu0 %v244, 112
    %v492 = vpop.permute.xlu0 %491
    %493 = vrot.lane.b32.xlu0 %v245, 48
    %v494 = vpop.permute.xlu0 %493
    %v496 = vsel %vm252, %v492, 0
    %v499 = vsel %vm252, %v494, 0
    %501 = vmatprep.subr.bf16.mxu0 0
    %502 = vmatpush1.bf16.xpose.msra.mxu0 0
    %503 = vmatprep.subr.bf16.mxu0 0
    %504 = vmatpush1.bf16.xpose.msra.mxu0 0
    %505 = vmatprep.subr.bf16.mxu0 0
    %506 = vmatpush1.bf16.xpose.msra.mxu0 0
    %507 = vmatprep.subr.bf16.mxu0 0
    %508 = vmatpush1.bf16.xpose.msra.mxu0 0
    %509 = vmatprep.subr.bf16.mxu0 0
    %510 = vmatpush1.bf16.xpose.msra.mxu0 0
    %511 = vmatprep.subr.bf16.mxu0 0
    %512 = vmatpush1.bf16.xpose.msra.mxu0 0
    %513 = vmatprep.subr.bf16.mxu0 0
    %514 = vmatpush1.bf16.xpose.msra.mxu0 0
    %515 = vmatprep.subr.bf16.mxu0 0
    %516 = vmatpush1.bf16.xpose.msra.mxu0 %v499
    %517 = vmatprep.subr.bf16.mxu0 0
    %518 = vmatpush2.bf16.xpose.msra.mxu0 0
    %519 = vmatprep.subr.bf16.mxu0 0
    %520 = vmatpush2.bf16.xpose.msra.mxu0 0
    %521 = vmatprep.subr.bf16.mxu0 0
    %522 = vmatpush2.bf16.xpose.msra.mxu0 0
    %523 = vmatprep.subr.bf16.mxu0 0
    %524 = vmatpush2.bf16.xpose.msra.mxu0 0
    %525 = vmatprep.subr.bf16.mxu0 0
    %526 = vmatpush2.bf16.xpose.msra.mxu0 0
    %527 = vmatprep.subr.bf16.mxu0 0
    %528 = vmatpush2.bf16.xpose.msra.mxu0 0
    %529 = vmatprep.subr.bf16.mxu0 0
    %530 = vmatpush2.bf16.xpose.msra.mxu0 0
    %531 = vmatprep.subr.bf16.mxu0 0
    %532 = vmatpush2.bf16.xpose.msra.mxu0 0
    %533 = vmatprep.mubr.bf16.mxu0 0
    %534 = vmatmul.mubr.bf16.gmra.mxu0 %v496
    %v535 = vpop.f32.mrf.mxu0
    %v536 = vadd.f32 %v247, %v535
    %v537 = vpop.f32.mrf.mxu0
    %v538 = vpop.f32.mrf.mxu0
    %v539 = vadd.f32 %v248, %v538
    %v540 = vpop.f32.mrf.mxu0
    %541 = vdwg.mxu0
    %v542 = vsel %vm300, %v536, -inf
    %543 = vmax.xlane.f32.xlu0 %v542
    %v544 = vpop.xlane.xlu0 %543
    %v545 = vsel %vm300, %v539, -inf
    %546 = vmax.xlane.f32.xlu0 %v545
    %v547 = vpop.xlane.xlu0 %546
    %v548 = vsub.f32 %v536, %v544
    %v549 = vsub.f32 %v539, %v547
    %v550 = vmul.f32 %v548, 1.442695
    %v551 = vpow.pop %v550
    %v552 = vmul.f32 %v549, 1.442695
    %v553 = vpow.pop %v552
    %v554 = vsel %vm300, %v551, 0.0
    %555 = vadd.xlane.f32.xlu0 %v554
    %v556 = vpop.xlane.xlu0 %555
    %v557 = vsel %vm300, %v553, 0.0
    %558 = vadd.xlane.f32.xlu0 %v557
    %v559 = vpop.xlane.xlu0 %558
    %v560 = vrcp.pop %v556
    %v561 = vrcp.pop %v559
    %v562 = vmul.f32 %v551, %v560
    %v563 = vmul.f32 %v553, %v561
    %v564 = vpack.c.bf16 %v563, %v562
    %565 = vrot.lane.b32.xlu0 %v246, 112
    %v566 = vpop.permute.xlu0 %565
    %v569 = vsel %vm300, %v564, 0
    %571 = vmatprep.subr.bf16.mxu0 0
    %572 = vmatpush1.bf16.msra.mxu0 0
    %573 = vmatprep.subr.bf16.mxu0 0
    %574 = vmatpush1.bf16.msra.mxu0 0
    %575 = vmatprep.subr.bf16.mxu0 0
    %576 = vmatpush1.bf16.msra.mxu0 0
    %577 = vmatprep.subr.bf16.mxu0 0
    %578 = vmatpush1.bf16.msra.mxu0 0
    %579 = vmatprep.subr.bf16.mxu0 0
    %580 = vmatpush1.bf16.msra.mxu0 0
    %581 = vmatprep.subr.bf16.mxu0 0
    %582 = vmatpush1.bf16.msra.mxu0 0
    %583 = vmatprep.subr.bf16.mxu0 0
    %584 = vmatpush1.bf16.msra.mxu0 0
    %585 = vmatprep.subr.bf16.mxu0 0
    %586 = vmatpush1.bf16.msra.mxu0 %v566
    %587 = vmatprep.subr.bf16.mxu0 0
    %588 = vmatpush2.bf16.msra.mxu0 0
    %589 = vmatprep.subr.bf16.mxu0 0
    %590 = vmatpush2.bf16.msra.mxu0 0
    %591 = vmatprep.subr.bf16.mxu0 0
    %592 = vmatpush2.bf16.msra.mxu0 0
    %593 = vmatprep.subr.bf16.mxu0 0
    %594 = vmatpush2.bf16.msra.mxu0 0
    %595 = vmatprep.subr.bf16.mxu0 0
    %596 = vmatpush2.bf16.msra.mxu0 0
    %597 = vmatprep.subr.bf16.mxu0 0
    %598 = vmatpush2.bf16.msra.mxu0 0
    %599 = vmatprep.subr.bf16.mxu0 0
    %600 = vmatpush2.bf16.msra.mxu0 0
    %601 = vmatprep.subr.bf16.mxu0 0
    %602 = vmatpush2.bf16.msra.mxu0 0
    %603 = vmatprep.mubr.bf16.mxu0 0
    %604 = vmatmul.mubr.bf16.gmra.mxu0 %v569
    %v605 = vpop.f32.mrf.mxu0
    %v606 = vadd.f32 0.0, %v605
    %v607 = vpop.f32.mrf.mxu0
    %v608 = vpop.f32.mrf.mxu0
    %v609 = vadd.f32 0.0, %v608
    %v610 = vpop.f32.mrf.mxu0
    %611 = vdwg.mxu0
    %612 = vrot.lane.b32.xlu0 %v244, 104
    %v613 = vpop.permute.xlu0 %612
    %614 = vrot.lane.b32.xlu0 %v245, 40
    %v615 = vpop.permute.xlu0 %614
    %v617 = vsel %vm252, %v613, 0
    %v620 = vsel %vm252, %v615, 0
    %622 = vmatprep.subr.bf16.mxu0 0
    %623 = vmatpush1.bf16.xpose.msra.mxu0 0
    %624 = vmatprep.subr.bf16.mxu0 0
    %625 = vmatpush1.bf16.xpose.msra.mxu0 0
    %626 = vmatprep.subr.bf16.mxu0 0
    %627 = vmatpush1.bf16.xpose.msra.mxu0 0
    %628 = vmatprep.subr.bf16.mxu0 0
    %629 = vmatpush1.bf16.xpose.msra.mxu0 0
    %630 = vmatprep.subr.bf16.mxu0 0
    %631 = vmatpush1.bf16.xpose.msra.mxu0 0
    %632 = vmatprep.subr.bf16.mxu0 0
    %633 = vmatpush1.bf16.xpose.msra.mxu0 0
    %634 = vmatprep.subr.bf16.mxu0 0
    %635 = vmatpush1.bf16.xpose.msra.mxu0 0
    %636 = vmatprep.subr.bf16.mxu0 0
    %637 = vmatpush1.bf16.xpose.msra.mxu0 %v620
    %638 = vmatprep.subr.bf16.mxu0 0
    %639 = vmatpush2.bf16.xpose.msra.mxu0 0
    %640 = vmatprep.subr.bf16.mxu0 0
    %641 = vmatpush2.bf16.xpose.msra.mxu0 0
    %642 = vmatprep.subr.bf16.mxu0 0
    %643 = vmatpush2.bf16.xpose.msra.mxu0 0
    %644 = vmatprep.subr.bf16.mxu0 0
    %645 = vmatpush2.bf16.xpose.msra.mxu0 0
    %646 = vmatprep.subr.bf16.mxu0 0
    %647 = vmatpush2.bf16.xpose.msra.mxu0 0
    %648 = vmatprep.subr.bf16.mxu0 0
    %649 = vmatpush2.bf16.xpose.msra.mxu0 0
    %650 = vmatprep.subr.bf16.mxu0 0
    %651 = vmatpush2.bf16.xpose.msra.mxu0 0
    %652 = vmatprep.subr.bf16.mxu0 0
    %653 = vmatpush2.bf16.xpose.msra.mxu0 0
    %654 = vmatprep.mubr.bf16.mxu0 0
    %655 = vmatmul.mubr.bf16.gmra.mxu0 %v617
    %v656 = vpop.f32.mrf.mxu0
    %v657 = vadd.f32 %v247, %v656
    %v658 = vpop.f32.mrf.mxu0
    %v659 = vpop.f32.mrf.mxu0
    %v660 = vadd.f32 %v248, %v659
    %v661 = vpop.f32.mrf.mxu0
    %662 = vdwg.mxu0
    %v663 = vsel %vm300, %v657, -inf
    %664 = vmax.xlane.f32.xlu0 %v663
    %v665 = vpop.xlane.xlu0 %664
    %v666 = vsel %vm300, %v660, -inf
    %667 = vmax.xlane.f32.xlu0 %v666
    %v668 = vpop.xlane.xlu0 %667
    %v669 = vsub.f32 %v657, %v665
    %v670 = vsub.f32 %v660, %v668
    %v671 = vmul.f32 %v669, 1.442695
    %v672 = vpow.pop %v671
    %v673 = vmul.f32 %v670, 1.442695
    %v674 = vpow.pop %v673
    %v675 = vsel %vm300, %v672, 0.0
    %676 = vadd.xlane.f32.xlu0 %v675
    %v677 = vpop.xlane.xlu0 %676
    %v678 = vsel %vm300, %v674, 0.0
    %679 = vadd.xlane.f32.xlu0 %v678
    %v680 = vpop.xlane.xlu0 %679
    %v681 = vrcp.pop %v677
    %v682 = vrcp.pop %v680
    %v683 = vmul.f32 %v672, %v681
    %v684 = vmul.f32 %v674, %v682
    %v685 = vpack.c.bf16 %v684, %v683
    %686 = vrot.lane.b32.xlu0 %v246, 104
    %v687 = vpop.permute.xlu0 %686
    %v690 = vsel %vm300, %v685, 0
    %692 = vmatprep.subr.bf16.mxu0 0
    %693 = vmatpush1.bf16.msra.mxu0 0
    %694 = vmatprep.subr.bf16.mxu0 0
    %695 = vmatpush1.bf16.msra.mxu0 0
    %696 = vmatprep.subr.bf16.mxu0 0
    %697 = vmatpush1.bf16.msra.mxu0 0
    %698 = vmatprep.subr.bf16.mxu0 0
    %699 = vmatpush1.bf16.msra.mxu0 0
    %700 = vmatprep.subr.bf16.mxu0 0
    %701 = vmatpush1.bf16.msra.mxu0 0
    %702 = vmatprep.subr.bf16.mxu0 0
    %703 = vmatpush1.bf16.msra.mxu0 0
    %704 = vmatprep.subr.bf16.mxu0 0
    %705 = vmatpush1.bf16.msra.mxu0 0
    %706 = vmatprep.subr.bf16.mxu0 0
    %707 = vmatpush1.bf16.msra.mxu0 %v687
    %708 = vmatprep.subr.bf16.mxu0 0
    %709 = vmatpush2.bf16.msra.mxu0 0
    %710 = vmatprep.subr.bf16.mxu0 0
    %711 = vmatpush2.bf16.msra.mxu0 0
    %712 = vmatprep.subr.bf16.mxu0 0
    %713 = vmatpush2.bf16.msra.mxu0 0
    %714 = vmatprep.subr.bf16.mxu0 0
    %715 = vmatpush2.bf16.msra.mxu0 0
    %716 = vmatprep.subr.bf16.mxu0 0
    %717 = vmatpush2.bf16.msra.mxu0 0
    %718 = vmatprep.subr.bf16.mxu0 0
    %719 = vmatpush2.bf16.msra.mxu0 0
    %720 = vmatprep.subr.bf16.mxu0 0
    %721 = vmatpush2.bf16.msra.mxu0 0
    %722 = vmatprep.subr.bf16.mxu0 0
    %723 = vmatpush2.bf16.msra.mxu0 0
    %724 = vmatprep.mubr.bf16.mxu0 0
    %725 = vmatmul.mubr.bf16.gmra.mxu0 %v690
    %v726 = vpop.f32.mrf.mxu0
    %v727 = vadd.f32 0.0, %v726
    %v728 = vpop.f32.mrf.mxu0
    %v729 = vpop.f32.mrf.mxu0
    %v730 = vadd.f32 0.0, %v729
    %v731 = vpop.f32.mrf.mxu0
    %732 = vdwg.mxu0
    %735 = vrot.lane.b32.xlu0 %v485, 8
    %v736 = vpop.permute.xlu0 %735
    %737 = vrot.lane.b32.xlu0 %v488, 8
    %v738 = vpop.permute.xlu0 %737
    %743 = vrot.lane.b32.xlu0 %v606, 16
    %v744 = vpop.permute.xlu0 %743
    %745 = vrot.lane.b32.xlu0 %v609, 16
    %v746 = vpop.permute.xlu0 %745
    %751 = vrot.lane.b32.xlu0 %v727, 24
    %v752 = vpop.permute.xlu0 %751
    %753 = vrot.lane.b32.xlu0 %v730, 24
    %v754 = vpop.permute.xlu0 %753
    %v757 = vsel %vm252, %v362, %v736
    %v758 = vsel %vm252, %v365, %v738
    %v759 = vsel %vm300, %v757, %v744
    %v760 = vsel %vm300, %v758, %v746
    %vm761 = vcmask 195584
    %v762 = vsel %vm761, %v759, %v752
    %v763 = vsel %vm761, %v760, %v754
    %v764 = vpack.c.bf16 %v763, %v762
    %v765 = vld [vmem:[#allocation2] sm:$0xf]
    %v766 = vld [vmem:[#allocation2 + $0x4] sm:$0xf]
    %v767 = vld [vmem:[#allocation2 + $0x8] sm:$0xf]
    %v768 = vld [vmem:[#allocation2 + $0xc] sm:$0xf]
    %v773 = vunpack.c.l.b16 %v765
    %v774 = vunpack.c.l.b16 %v766
    %v775 = vunpack.c.l.b16 %v767
    %v776 = vunpack.c.l.b16 %v768
    %v777 = vpack.c.b16 %v774, %v773
    %v778 = vpack.c.b16 %v776, %v775
    %v782 = vsel %vm103, %v764, 0
    %784 = vmatprep.subr.bf16.mxu0 0
    %785 = vmatpush1.bf16.msra.mxu0 0
    %786 = vmatprep.subr.bf16.mxu0 0
    %787 = vmatpush1.bf16.msra.mxu0 0
    %788 = vmatprep.subr.bf16.mxu0 0
    %789 = vmatpush1.bf16.msra.mxu0 0
    %790 = vmatprep.subr.bf16.mxu0 0
    %791 = vmatpush1.bf16.msra.mxu0 0
    %792 = vmatprep.subr.bf16.mxu0 0
    %793 = vmatpush1.bf16.msra.mxu0 0
    %794 = vmatprep.subr.bf16.mxu0 0
    %795 = vmatpush1.bf16.msra.mxu0 0
    %796 = vmatprep.subr.bf16.mxu0 0
    %797 = vmatpush1.bf16.msra.mxu0 %v778
    %798 = vmatprep.subr.bf16.mxu0 0
    %799 = vmatpush1.bf16.msra.mxu0 %v777
    %800 = vmatprep.subr.bf16.mxu0 0
    %801 = vmatpush2.bf16.msra.mxu0 0
    %802 = vmatprep.subr.bf16.mxu0 0
    %803 = vmatpush2.bf16.msra.mxu0 0
    %804 = vmatprep.subr.bf16.mxu0 0
    %805 = vmatpush2.bf16.msra.mxu0 0
    %806 = vmatprep.subr.bf16.mxu0 0
    %807 = vmatpush2.bf16.msra.mxu0 0
    %808 = vmatprep.subr.bf16.mxu0 0
    %809 = vmatpush2.bf16.msra.mxu0 0
    %810 = vmatprep.subr.bf16.mxu0 0
    %811 = vmatpush2.bf16.msra.mxu0 0
    %812 = vmatprep.subr.bf16.mxu0 0
    %813 = vmatpush2.bf16.msra.mxu0 0
    %814 = vmatprep.subr.bf16.mxu0 0
    %815 = vmatpush2.bf16.msra.mxu0 0
    %816 = vmatprep.mubr.bf16.mxu0 0
    %817 = vmatmul.mubr.bf16.gmra.mxu0 %v782
    %v818 = vpop.f32.mrf.mxu0
    %v819 = vadd.f32 0.0, %v818
    %v820 = vpop.f32.mrf.mxu0
    %v821 = vpop.f32.mrf.mxu0
    %v822 = vadd.f32 0.0, %v821
    %v823 = vpop.f32.mrf.mxu0
    %824 = vdwg.mxu0
    %v825 = vadd.f32 %v99, %v819
    %v826 = vadd.f32 %v100, %v822
    %v827 = vmul.f32 %v825, %v825
    %v828 = vmul.f32 %v826, %v826
    %v829 = vsel %vm103, %v827, 0.0
    %830 = vadd.xlane.f32.xlu0 %v829
    %v831 = vpop.xlane.xlu0 %830
    %v832 = vsel %vm103, %v828, 0.0
    %833 = vadd.xlane.f32.xlu0 %v832
    %v834 = vpop.xlane.xlu0 %833
    %v835 = vmul.f32 %v831, %v110
    %v836 = vmul.f32 %v834, %v110
    %v837 = vadd.f32 %v835, 1e-06
    %v838 = vadd.f32 %v836, 1e-06
    %v839 = vrsqrt.pop %v837
    %v840 = vrsqrt.pop %v838
    %v841 = vmul.f32 %v825, %v839
    %v842 = vmul.f32 %v826, %v840
    %v843 = vpack.c.bf16 %v842, %v841
    %v844 = vld [vmem:[#allocation5] sm:$0xf]
    %v845 = vld [vmem:[#allocation5 + $0x4] sm:$0xf]
    %v846 = vld [vmem:[#allocation5 + $0x8] sm:$0xf]
    %v847 = vld [vmem:[#allocation5 + $0xc] sm:$0xf]
    %v852 = vunpack.c.l.b16 %v844
    %v853 = vunpack.c.l.b16 %v845
    %v854 = vunpack.c.l.b16 %v846
    %v855 = vunpack.c.l.b16 %v847
    %v856 = vpack.c.b16 %v853, %v852
    %v857 = vpack.c.b16 %v855, %v854
    %v861 = vsel %vm103, %v843, 0
    %863 = vmatprep.subr.bf16.mxu0 0
    %864 = vmatpush1.bf16.msra.mxu0 0
    %865 = vmatprep.subr.bf16.mxu0 0
    %866 = vmatpush1.bf16.msra.mxu0 0
    %867 = vmatprep.subr.bf16.mxu0 0
    %868 = vmatpush1.bf16.msra.mxu0 0
    %869 = vmatprep.subr.bf16.mxu0 0
    %870 = vmatpush1.bf16.msra.mxu0 0
    %871 = vmatprep.subr.bf16.mxu0 0
    %872 = vmatpush1.bf16.msra.mxu0 0
    %873 = vmatprep.subr.bf16.mxu0 0
    %874 = vmatpush1.bf16.msra.mxu0 0
    %875 = vmatprep.subr.bf16.mxu0 0
    %876 = vmatpush1.bf16.msra.mxu0 %v857
    %877 = vmatprep.subr.bf16.mxu0 0
    %878 = vmatpush1.bf16.msra.mxu0 %v856
    %879 = vmatprep.subr.bf16.mxu0 0
    %880 = vmatpush2.bf16.msra.mxu0 0
    %881 = vmatprep.subr.bf16.mxu0 0
    %882 = vmatpush2.bf16.msra.mxu0 0
    %883 = vmatprep.subr.bf16.mxu0 0
    %884 = vmatpush2.bf16.msra.mxu0 0
    %885 = vmatprep.subr.bf16.mxu0 0
    %886 = vmatpush2.bf16.msra.mxu0 0
    %887 = vmatprep.subr.bf16.mxu0 0
    %888 = vmatpush2.bf16.msra.mxu0 0
    %889 = vmatprep.subr.bf16.mxu0 0
    %890 = vmatpush2.bf16.msra.mxu0 0
    %891 = vmatprep.subr.bf16.mxu0 0
    %892 = vmatpush2.bf16.msra.mxu0 0
    %893 = vmatprep.subr.bf16.mxu0 0
    %894 = vmatpush2.bf16.msra.mxu0 0
    %895 = vmatprep.mubr.bf16.mxu0 0
    %896 = vmatmul.mubr.bf16.gmra.mxu0 %v861
    %v897 = vpop.f32.mrf.mxu0
    %v898 = vadd.f32 0.0, %v897
    %v899 = vpop.f32.mrf.mxu0
    %v900 = vpop.f32.mrf.mxu0
    %v901 = vadd.f32 0.0, %v900
    %v902 = vpop.f32.mrf.mxu0
    %903 = vdwg.mxu0
    %v904 = vmul.f32 %v898, 0.5
    %v905 = vmul.f32 %v901, 0.5
    %v906 = vtanh.pop %v904
    %v907 = vtanh.pop %v905
    %v908 = vadd.f32 %v906, 1.0
    %v909 = vadd.f32 %v907, 1.0
    %v910 = vmul.f32 %v908, 0.5
    %v911 = vmul.f32 %v909, 0.5
    %v912 = vmul.f32 %v898, %v910
    %v913 = vmul.f32 %v901, %v911
    %916 = vrot.lane.b32.xlu0 %v898, 64
    %v917 = vpop.permute.xlu0 %916
    %918 = vrot.lane.b32.xlu0 %v901, 64
    %v919 = vpop.permute.xlu0 %918
    %v922 = vmul.f32 %v912, %v917
    %v923 = vmul.f32 %v913, %v919
    %v924 = vpack.c.bf16 %v923, %v922
    %v925 = vld [vmem:[%s4] sm:$0xf]
    %v926 = vld [vmem:[%s4 + $0x4] sm:$0xf]
    %v927 = vld [vmem:[%s4 + $0x8] sm:$0xf]
    %v928 = vld [vmem:[%s4 + $0xc] sm:$0xf]
    %v929 = vld [vmem:[%s4 + $0x10] sm:$0xf]
    %v930 = vld [vmem:[%s4 + $0x14] sm:$0xf]
    %v931 = vld [vmem:[%s4 + $0x18] sm:$0xf]
    %v932 = vld [vmem:[%s4 + $0x1c] sm:$0xf]
    %v941 = vunpack.c.l.b16 %v925
    %v942 = vunpack.c.l.b16 %v926
    %v943 = vunpack.c.l.b16 %v927
    %v944 = vunpack.c.l.b16 %v928
    %v945 = vunpack.c.l.b16 %v929
    %v946 = vunpack.c.l.b16 %v930
    %v947 = vunpack.c.l.b16 %v931
    %v948 = vunpack.c.l.b16 %v932
    %v949 = vpack.c.b16 %v942, %v941
    %v950 = vpack.c.b16 %v944, %v943
    %v951 = vpack.c.b16 %v946, %v945
    %v952 = vpack.c.b16 %v948, %v947
    %vm957 = vcmask 523264
    %v959 = vsel %vm957, %v924, 0
    %961 = vmatprep.subr.bf16.mxu0 0
    %962 = vmatpush1.bf16.msra.mxu0 0
    %963 = vmatprep.subr.bf16.mxu0 0
    %964 = vmatpush1.bf16.msra.mxu0 0
    %965 = vmatprep.subr.bf16.mxu0 0
    %966 = vmatpush1.bf16.msra.mxu0 0
    %967 = vmatprep.subr.bf16.mxu0 0
    %968 = vmatpush1.bf16.msra.mxu0 0
    %969 = vmatprep.subr.bf16.mxu0 0
    %970 = vmatpush1.bf16.msra.mxu0 %v952
    %971 = vmatprep.subr.bf16.mxu0 0
    %972 = vmatpush1.bf16.msra.mxu0 %v951
    %973 = vmatprep.subr.bf16.mxu0 0
    %974 = vmatpush1.bf16.msra.mxu0 %v950
    %975 = vmatprep.subr.bf16.mxu0 0
    %976 = vmatpush1.bf16.msra.mxu0 %v949
    %977 = vmatprep.subr.bf16.mxu0 0
    %978 = vmatpush2.bf16.msra.mxu0 0
    %979 = vmatprep.subr.bf16.mxu0 0
    %980 = vmatpush2.bf16.msra.mxu0 0
    %981 = vmatprep.subr.bf16.mxu0 0
    %982 = vmatpush2.bf16.msra.mxu0 0
    %983 = vmatprep.subr.bf16.mxu0 0
    %984 = vmatpush2.bf16.msra.mxu0 0
    %985 = vmatprep.subr.bf16.mxu0 0
    %986 = vmatpush2.bf16.msra.mxu0 0
    %987 = vmatprep.subr.bf16.mxu0 0
    %988 = vmatpush2.bf16.msra.mxu0 0
    %989 = vmatprep.subr.bf16.mxu0 0
    %990 = vmatpush2.bf16.msra.mxu0 0
    %991 = vmatprep.subr.bf16.mxu0 0
    %992 = vmatpush2.bf16.msra.mxu0 0
    %993 = vmatprep.mubr.bf16.mxu0 0
    %994 = vmatmul.mubr.bf16.gmra.mxu0 %v959
    %v995 = vpop.f32.mrf.mxu0
    %v996 = vadd.f32 0.0, %v995
    %v997 = vpop.f32.mrf.mxu0
    %v998 = vpop.f32.mrf.mxu0
    %v999 = vadd.f32 0.0, %v998
    %v1000 = vpop.f32.mrf.mxu0
    %1001 = vdwg.mxu0
    %v1002 = vadd.f32 %v825, %v996
    %v1003 = vadd.f32 %v826, %v999
    %1004 = vst.msk [vmem:[#allocation11] sm:$0xff] %vm103, %v1002
    %1005 = vst.msk [vmem:[#allocation11 + $0x8] sm:$0xff] %vm103, %v1003
    // Predicated region
    $region54: #{pico_block_forward.1} parent=1 // pred_check
      _
    $region55: #{pico_block_forward.1} parent=1 // pred_check_branch
      %1007 = sbr.rel (0) target = $region57
    $region56: #{pico_block_forward.1} parent=1 // pred_region
      %s1009 = ssub.s32 256, 256
      %1010 = vsyncadd [#allocation4], %s1009
      %s1011 = sshll.u32 [#allocation11], 4
      %s1012 = int_to_ptr.vmem [resolvable:$true] %s1011
      %1017 = dma.vmem_to_hbm [thread:$0]  %s1012, 256, %s8, [#allocation4], 128, 128, 8
    $region57: #{pico_block_forward.1} parent=1 // pred_fallthru
      _
    // Predicated region
    $region58: #{pico_block_forward.1} parent=1 // pred_check
      _
    $region59: #{pico_block_forward.1} parent=1 // pred_check_branch
      %1019 = sbr.rel (0) target = $region61
    $region60: #{pico_block_forward.1} parent=1 // pred_region
      %1020 = dma.done [#allocation4], 256
    $region61: #{pico_block_forward.1} parent=1 // pred_fallthru
      _
    %1021 = vsyncpa [#allocation3], 1
    %1022 = vsyncpa [#allocation6], 1
    %1023 = vsyncpa [#allocation9], 1
    %1024 = vsyncpa [#allocation4], 1

</llo_original>
